<compile_context>
chip_gen: v5e
topology: v5e:2x2
jax: 0.10.0
libtpu: 0.0.40
codegen_flags: <defaults>
</compile_context>

<pallas_src>
import functools

import jax
import jax.numpy as jnp
from jax.experimental import pallas as pl
from jax.experimental.pallas import tpu as pltpu


def _dropnorm_kernel(x_ref, mask_ref, gamma_ref, beta_ref, y_ref, *,
                     inv_keep_prob: float, eps: float):
    # Tiny resident parameter rows; all statistics are done in f32 regardless
    # of the input dtype.
    m = mask_ref[...].astype(jnp.float32)          # (1, D), 0/1
    g = gamma_ref[...].astype(jnp.float32)         # (1, D)
    b = beta_ref[...].astype(jnp.float32)          # (1, D)
    x = x_ref[...].astype(jnp.float32)             # (TILE_B, D)

    xm = x * m                                     # dropped features -> 0

    # Kept-feature count from the ACTUAL mask (robust to any caller mask).
    k = jnp.sum(m, axis=1, keepdims=True)          # (1, 1)

    # Masked two-pass mean / unbiased variance (torch.var default, divisor K-1).
    mu = jnp.sum(xm, axis=1, keepdims=True) / k                      # (TILE_B, 1)
    diff = (xm - mu) * m                                             # re-masked
    sigma2 = jnp.sum(diff * diff, axis=1, keepdims=True) / (k - 1.0)

    rinv = jax.lax.rsqrt(sigma2 + eps)                               # (TILE_B, 1)

    # y = gamma * (xm/(1-p) - mu) * rsqrt(sigma2 + eps) + beta, one fused pass.
    y = (xm * inv_keep_prob - mu) * (g * rinv) + b
    y_ref[...] = y.astype(y_ref.dtype)


def _ceil_to(v: int, m: int) -> int:
    return ((v + m - 1) // m) * m


def dropnorm_forward(x, mask, gamma, beta, *, p: float, tile_b: int | None = None):
    """Training-mode DropNorm forward.

    x: (B, D). mask/gamma/beta: (D,). Returns (B, D) in x's dtype.
    """
    B, D = x.shape
    assert D - int(D * p) >= 2, "DropNorm needs >= 2 kept features (var uses K-1)"

    in_item = jnp.dtype(x.dtype).itemsize
    out_item = in_item                       # output keeps x's dtype

    # (1, D) parameter rows — full-extent last dim, no lane padding needed.
    mask2d = mask.reshape(1, D)
    gamma2d = gamma.reshape(1, D)
    beta2d = beta.reshape(1, D)

    # --- generation-aware VMEM capacity --------------------------------------
    try:
        info = pltpu.get_tpu_info()
        vmem_cap = int(getattr(info, "vmem_capacity_bytes", 0)) or 64 * 1024 * 1024
    except Exception:
        # Fall back to the smallest per-core VMEM across supported gens (v7x).
        vmem_cap = 64 * 1024 * 1024

    # --- batch tile sizing ----------------------------------------------------
    if tile_b is None:
        # Size the double-buffered working set (2 input + 2 output buffers)
        # against ~half the per-core VMEM (capped), then clamp so the grid
        # keeps enough steps for pipelining / megacore sharding.
        budget = min(vmem_cap // 2, 48 * 1024 * 1024)
        bytes_per_row = 2 * D * in_item + 2 * D * out_item
        tile_b = max(8, (budget // max(bytes_per_row, 1)) // 8 * 8)
        if B >= 8 * 8:
            tile_b = min(tile_b, _ceil_to(pl.cdiv(B, 8), 8))   # >= 8 grid steps
        elif B >= 16:
            tile_b = min(tile_b, _ceil_to(pl.cdiv(B, 2), 8))   # >= 2 grid steps
        tile_b = max(8, min(tile_b, _ceil_to(B, 8)))
    if B <= 8:
        tile_b = B                     # single full-extent block for tiny batches

    grid = (pl.cdiv(B, tile_b),)

    # Explicit scoped-VMEM limit sized from the actual working set (+ headroom),
    # so larger tiles aren't silently capped by the per-generation default.
    working_set = (2 * tile_b * D * in_item          # double-buffered x tiles
                   + 2 * tile_b * D * out_item       # double-buffered y tiles
                   + 2 * 3 * D * 4)                  # resident param rows
    vmem_limit = int(min(vmem_cap, max(2 * working_set, 16 * 1024 * 1024)))

    kernel = functools.partial(
        _dropnorm_kernel, inv_keep_prob=1.0 / (1.0 - p), eps=1e-5)

    return pl.pallas_call(
        kernel,
        out_shape=jax.ShapeDtypeStruct((B, D), x.dtype),
        grid=grid,
        in_specs=[
            pl.BlockSpec((tile_b, D), lambda i: (i, 0)),   # x: streamed per tile
            pl.BlockSpec((1, D), lambda i: (0, 0)),        # mask: resident
            pl.BlockSpec((1, D), lambda i: (0, 0)),        # gamma: resident
            pl.BlockSpec((1, D), lambda i: (0, 0)),        # beta: resident
        ],
        out_specs=pl.BlockSpec((tile_b, D), lambda i: (i, 0)),
        compiler_params=pltpu.CompilerParams(
            dimension_semantics=("parallel",),             # megacore on v7x
            vmem_limit_bytes=vmem_limit,
        ),
    )(x, mask2d, gamma2d, beta2d)


def _reference(x, mask, gamma, beta, p):
    """Pure-JAX reference mirroring the PyTorch training forward."""
    k = jnp.sum(mask)
    xm = x * mask[None, :]
    mu = jnp.sum(xm, axis=1, keepdims=True) / k
    diff = (xm - mu) * mask[None, :]
    sigma2 = jnp.sum(diff * diff, axis=1, keepdims=True) / (k - 1.0)
    xs = xm / (1.0 - p)
    xhat = (xs - mu) / jnp.sqrt(sigma2 + 1e-5)
    return gamma[None, :] * xhat + beta[None, :]


if __name__ == "__main__":
    B, D = 16, 32         # batch=16, bn_size=32
    p = 0.5

    key = jax.random.PRNGKey(0)
    kx, kmask = jax.random.split(key)

    x = jax.random.normal(kx, (B, D), dtype=jnp.float32)

    # Deterministic stand-in for np.random.choice(..., replace=False):
    # zero out the first int(D*p) indices of a fixed random permutation.
    n_zero = int(D * p)
    perm = jax.random.permutation(kmask, D)
    mask = jnp.ones((D,), jnp.float32).at[perm[:n_zero]].set(0.0)

    # Parameters: gamma=ones, beta=zeros (as in __init__).
    gamma = jnp.ones((D,), jnp.float32)
    beta = jnp.zeros((D,), jnp.float32)

    # Default heuristic: tile_b=8 -> 2 pipelined grid steps at this batch size.
    y = dropnorm_forward(x, mask, gamma, beta, p=p)
    y = jax.block_until_ready(y)

    y_ref = _reference(x, mask, gamma, beta, p)
    assert y.shape == y_ref.shape, "shape mismatch vs reference"
    assert jnp.allclose(y, y_ref, atol=1e-4, rtol=1e-4), "mismatch vs reference"

    print("KERNEL_OK")
</pallas_src>

<mosaic_0001>
module attributes {stable_mosaic.version = 11 : i64} {
  func.func @_dropnorm_kernel(%arg0: i32, %arg1: memref<8x32xf32, #tpu.memory_space<vmem>>, %arg2: memref<1x32xf32, #tpu.memory_space<vmem>>, %arg3: memref<1x32xf32, #tpu.memory_space<vmem>>, %arg4: memref<1x32xf32, #tpu.memory_space<vmem>>, %arg5: memref<8x32xf32, #tpu.memory_space<vmem>>) attributes {dimension_semantics = [#tpu.dimension_semantics<parallel>], iteration_bounds = array<i64: 2>, scalar_prefetch = 0 : i64, scratch_operands = 0 : i64, tpu.core_type = #tpu.core_type<tc>, window_params = [{transform_indices = @transform_0, window_bounds = array<i64: 8, 32>}, {pipeline_mode = #tpu.pipeline_mode<synchronous>, transform_indices = @transform_1, window_bounds = array<i64: 1, 32>}, {pipeline_mode = #tpu.pipeline_mode<synchronous>, transform_indices = @transform_2, window_bounds = array<i64: 1, 32>}, {pipeline_mode = #tpu.pipeline_mode<synchronous>, transform_indices = @transform_3, window_bounds = array<i64: 1, 32>}, {transform_indices = @transform_4, window_bounds = array<i64: 8, 32>}]} {
    %c0 = arith.constant 0 : index
    %c0_0 = arith.constant 0 : index
    %0 = vector.load %arg2[%c0, %c0_0] : memref<1x32xf32, #tpu.memory_space<vmem>>, vector<1x32xf32>
    %c0_1 = arith.constant 0 : index
    %c0_2 = arith.constant 0 : index
    %1 = vector.load %arg3[%c0_1, %c0_2] : memref<1x32xf32, #tpu.memory_space<vmem>>, vector<1x32xf32>
    %c0_3 = arith.constant 0 : index
    %c0_4 = arith.constant 0 : index
    %2 = vector.load %arg4[%c0_3, %c0_4] : memref<1x32xf32, #tpu.memory_space<vmem>>, vector<1x32xf32>
    %c0_5 = arith.constant 0 : index
    %c0_6 = arith.constant 0 : index
    %3 = vector.load %arg1[%c0_5, %c0_6] : memref<8x32xf32, #tpu.memory_space<vmem>>, vector<8x32xf32>
    %4 = vector.broadcast %0 : vector<1x32xf32> to vector<8x32xf32>
    %5 = arith.mulf %3, %4 : vector<8x32xf32>
    %cst = arith.constant dense<0.000000e+00> : vector<1xf32>
    %6 = vector.multi_reduction <add>, %0, %cst [1] : vector<1x32xf32> to vector<1xf32>
    %7 = vector.shape_cast %6 : vector<1xf32> to vector<1x1xf32>
    %cst_7 = arith.constant dense<0.000000e+00> : vector<8xf32>
    %8 = vector.multi_reduction <add>, %5, %cst_7 [1] : vector<8x32xf32> to vector<8xf32>
    %9 = vector.shape_cast %8 : vector<8xf32> to vector<8x1xf32>
    %10 = vector.broadcast %7 : vector<1x1xf32> to vector<8x1xf32>
    %11 = arith.divf %9, %10 : vector<8x1xf32>
    %12 = vector.broadcast %11 : vector<8x1xf32> to vector<8x32xf32>
    %13 = arith.subf %5, %12 : vector<8x32xf32>
    %14 = vector.broadcast %0 : vector<1x32xf32> to vector<8x32xf32>
    %15 = arith.mulf %13, %14 : vector<8x32xf32>
    %16 = arith.mulf %15, %15 : vector<8x32xf32>
    %cst_8 = arith.constant dense<0.000000e+00> : vector<8xf32>
    %17 = vector.multi_reduction <add>, %16, %cst_8 [1] : vector<8x32xf32> to vector<8xf32>
    %18 = vector.shape_cast %17 : vector<8xf32> to vector<8x1xf32>
    %cst_9 = arith.constant 1.000000e+00 : f32
    %19 = vector.broadcast %cst_9 : f32 to vector<1x1xf32>
    %20 = arith.subf %7, %19 : vector<1x1xf32>
    %21 = vector.broadcast %20 : vector<1x1xf32> to vector<8x1xf32>
    %22 = arith.divf %18, %21 : vector<8x1xf32>
    %cst_10 = arith.constant 9.99999974E-6 : f32
    %23 = vector.broadcast %cst_10 : f32 to vector<8x1xf32>
    %24 = arith.addf %22, %23 : vector<8x1xf32>
    %25 = math.rsqrt %24 : vector<8x1xf32>
    %cst_11 = arith.constant 2.000000e+00 : f32
    %26 = vector.broadcast %cst_11 : f32 to vector<8x32xf32>
    %27 = arith.mulf %5, %26 : vector<8x32xf32>
    %28 = vector.broadcast %11 : vector<8x1xf32> to vector<8x32xf32>
    %29 = arith.subf %27, %28 : vector<8x32xf32>
    %30 = vector.broadcast %1 : vector<1x32xf32> to vector<8x32xf32>
    %31 = vector.broadcast %25 : vector<8x1xf32> to vector<8x32xf32>
    %32 = arith.mulf %30, %31 : vector<8x32xf32>
    %33 = arith.mulf %29, %32 : vector<8x32xf32>
    %34 = vector.broadcast %2 : vector<1x32xf32> to vector<8x32xf32>
    %35 = arith.addf %33, %34 : vector<8x32xf32>
    %c0_12 = arith.constant 0 : index
    %c0_13 = arith.constant 0 : index
    %36 = vector.load %arg5[%c0_12, %c0_13] : memref<8x32xf32, #tpu.memory_space<vmem>>, vector<8x32xf32>
    tpu.vector_store %arg5[%c0_12, %c0_13], %35 {strides = array<i32>} : memref<8x32xf32, #tpu.memory_space<vmem>>, vector<8x32xf32>,
    return
  }
  func.func @transform_0(%arg0: i32) -> (i32, i32) {
    %c0_i32 = arith.constant 0 : i32
    %c0_i32_0 = arith.constant 0 : i32
    return %arg0, %c0_i32 : i32, i32
  }
  func.func @transform_1(%arg0: i32) -> (i32, i32) {
    %c0_i32 = arith.constant 0 : i32
    %c0_i32_0 = arith.constant 0 : i32
    %c0_i32_1 = arith.constant 0 : i32
    return %c0_i32, %c0_i32_0 : i32, i32
  }
  func.func @transform_2(%arg0: i32) -> (i32, i32) {
    %c0_i32 = arith.constant 0 : i32
    %c0_i32_0 = arith.constant 0 : i32
    %c0_i32_1 = arith.constant 0 : i32
    return %c0_i32, %c0_i32_0 : i32, i32
  }
  func.func @transform_3(%arg0: i32) -> (i32, i32) {
    %c0_i32 = arith.constant 0 : i32
    %c0_i32_0 = arith.constant 0 : i32
    %c0_i32_1 = arith.constant 0 : i32
    return %c0_i32, %c0_i32_0 : i32, i32
  }
  func.func @transform_4(%arg0: i32) -> (i32, i32) {
    %c0_i32 = arith.constant 0 : i32
    %c0_i32_0 = arith.constant 0 : i32
    return %arg0, %c0_i32 : i32, i32
  }
}

</mosaic_0001>

<llo_original>
// kernel: tpu_custom_call.1
$region0: #{tpu_custom_call.1}
  #allocation0 [shape = 'u32[]', space=smem, size = 0x4, offset = 0x4, fixed_abs, tag = 'smem constant byte address 0x4 - core index']
  #allocation1 [shape = 'u32[72,128]{1,0:T(1,128)}', space=vmem, size = 0x9000, scoped, tag = 'internal scratch']
  %s0 = inlined_call_operand.hbm [shape: f32[16,32], index: 0, kind: input, shape index: {}]
  %s1 = inlined_call_operand.hbm [shape: f32[1,32], index: 1, kind: input, shape index: {}]
  %s2 = inlined_call_operand.vmem [shape: f32[1,32], index: 2, kind: input, shape index: {}]
  %s3 = inlined_call_operand.vmem [shape: f32[1,32], index: 3, kind: input, shape index: {}]
  %s4 = inlined_call_operand.hbm [shape: f32[16,32], index: 4, kind: output, shape index: {}]
  %s5 = sld [smem:[#allocation0]]
  $region57: #{tpu_custom_call.1} parent=0
    _
  %s7 = ssub.s32 1, %s5
  %s8 = scalar_select 0, %s7, %s5
  $region1: #{tpu_custom_call.1} parent=0
    #allocation2 [shape = 'u8[8192]{0}', space=vmem, size = 0x2000, scoped, tag = 'input window, operand 0']
    #allocation3 [shape = 's32[2]{0}', space=sflag, size = 0x8, scoped, tag = 'scoped memory for tpu_custom_call.1']
    #allocation4 [shape = 's32[2]{0}', space=sflag, size = 0x8, scoped, tag = 'scoped memory for tpu_custom_call.1']
    #allocation5 [shape = 'u8[512]{0}', space=vmem, size = 0x400, scoped, tag = 'input window, operand 1, single buffered']
    #allocation6 [shape = 's32[1]{0}', space=sflag, size = 0x4, scoped, tag = 'scoped memory for tpu_custom_call.1']
    #allocation7 [shape = 'u8[8192]{0}', space=vmem, size = 0x2000, scoped, tag = 'output window, operand 0']
    %9 = vsyncpa [#allocation3], 0
    %s10 = scalar_lea.sflag [#allocation3], 1
    %11 = vsyncpa %s10, 0
    %12 = vsyncpa [#allocation6], 0
    %13 = vsyncpa [#allocation4], 0
    %s14 = scalar_lea.sflag [#allocation4], 1
    %15 = vsyncpa %s14, 0
    loop: start=0, step=1, limit=4
    $region2: #{tpu_custom_call.1} parent=1 // loop_pre_header
      _
    $region3: #{tpu_custom_call.1} parent=1 // loop_header
      %s17 = sphi 0, %s21
      %p18 = scmp.ge.s32.totalorder %s17, 4
      %s27 = sphi 0, %s29
      %s30 = sphi 0, %s27
      %s31 = sphi 0, %s30
      %s47 = sphi 0, %s31
      %s51 = sphi 0, %s51
      %s53 = sphi 0, %s51
      %s54 = sphi 0, %s53
      %s68 = sphi 0, %s54
      %s72 = sphi 0, %s72
      %s74 = sphi 0, %s72
      %s75 = sphi 0, %s74
      %s89 = sphi 0, %s75
      %s93 = sphi 0, %s93
      %s95 = sphi 0, %s93
      %s96 = sphi 0, %s95
      %s110 = sphi 0, %s96
      %s116 = sphi 0, %s118
      %s119 = sphi 0, %s116
      %s120 = sphi 0, %s119
      %s136 = sphi 0, %s120
    $region4: #{tpu_custom_call.1} parent=1 // loop_header_branch
      %20 = sbr.rel (%p18) target = $region8
    $region5: #{tpu_custom_call.1} parent=1 // loop_body
      %s22 = ssub.s32 %s17, 1
      %s23 = ssub.s32 %s17, 2
      %s24 = sadd.s32 %s17, 1
      %s25 = ssub.s32 %s17, %s24
      %p26 = scmp.eq.s32.totalorder %s25, 0
      %s28 = sadd.s32 %s27, 1
      %s29 = scalar_select %p26, %s27, %s28
      %p32 = pneg %p26
      %p33 = scmp.eq.s32.totalorder %s17, 1
      %p34 = por %p32, %p33
      %p35 = scmp.ne.s32.totalorder %s27, %s30
      %p36 = scmp.eq.s32.totalorder %s17, 0
      %p37 = por %p35, %p36
      %p38 = scmp.ne.s32.totalorder %s27, %s30
      %p39 = scmp.eq.s32.totalorder %s22, 1
      %p40 = por %p38, %p39
      %p41 = scmp.ne.s32.totalorder %s30, %s31
      %p42 = scmp.eq.s32.totalorder %s22, 0
      %p43 = por %p41, %p42
      %p44 = scmp.ne.s32.totalorder %s30, %s31
      %p45 = scmp.eq.s32.totalorder %s23, 1
      %p46 = por %p44, %p45
      %p48 = scmp.ne.s32.totalorder %s31, %s47
      %p49 = scmp.eq.s32.totalorder %s23, 0
      %p50 = por %p48, %p49
      %s52 = sadd.s32 %s51, 1
      %p55 = scmp.eq.s32.totalorder %s17, 1
      %p56 = scmp.ne.s32.totalorder %s51, %s53
      %p57 = scmp.eq.s32.totalorder %s17, 0
      %p58 = por %p56, %p57
      %p59 = scmp.ne.s32.totalorder %s51, %s53
      %p60 = scmp.eq.s32.totalorder %s22, 1
      %p61 = por %p59, %p60
      %p62 = scmp.ne.s32.totalorder %s53, %s54
      %p63 = scmp.eq.s32.totalorder %s22, 0
      %p64 = por %p62, %p63
      %p65 = scmp.ne.s32.totalorder %s53, %s54
      %p66 = scmp.eq.s32.totalorder %s23, 1
      %p67 = por %p65, %p66
      %p69 = scmp.ne.s32.totalorder %s54, %s68
      %p70 = scmp.eq.s32.totalorder %s23, 0
      %p71 = por %p69, %p70
      %s73 = sadd.s32 %s72, 1
      %p76 = scmp.eq.s32.totalorder %s17, 1
      %p77 = scmp.ne.s32.totalorder %s72, %s74
      %p78 = scmp.eq.s32.totalorder %s17, 0
      %p79 = por %p77, %p78
      %p80 = scmp.ne.s32.totalorder %s72, %s74
      %p81 = scmp.eq.s32.totalorder %s22, 1
      %p82 = por %p80, %p81
      %p83 = scmp.ne.s32.totalorder %s74, %s75
      %p84 = scmp.eq.s32.totalorder %s22, 0
      %p85 = por %p83, %p84
      %p86 = scmp.ne.s32.totalorder %s74, %s75
      %p87 = scmp.eq.s32.totalorder %s23, 1
      %p88 = por %p86, %p87
      %p90 = scmp.ne.s32.totalorder %s75, %s89
      %p91 = scmp.eq.s32.totalorder %s23, 0
      %p92 = por %p90, %p91
      %s94 = sadd.s32 %s93, 1
      %p97 = scmp.eq.s32.totalorder %s17, 1
      %p98 = scmp.ne.s32.totalorder %s93, %s95
      %p99 = scmp.eq.s32.totalorder %s17, 0
      %p100 = por %p98, %p99
      %p101 = scmp.ne.s32.totalorder %s93, %s95
      %p102 = scmp.eq.s32.totalorder %s22, 1
      %p103 = por %p101, %p102
      %p104 = scmp.ne.s32.totalorder %s95, %s96
      %p105 = scmp.eq.s32.totalorder %s22, 0
      %p106 = por %p104, %p105
      %p107 = scmp.ne.s32.totalorder %s95, %s96
      %p108 = scmp.eq.s32.totalorder %s23, 1
      %p109 = por %p107, %p108
      %p111 = scmp.ne.s32.totalorder %s96, %s110
      %p112 = scmp.eq.s32.totalorder %s23, 0
      %p113 = por %p111, %p112
      %s114 = ssub.s32 %s17, %s24
      %p115 = scmp.eq.s32.totalorder %s114, 0
      %s117 = sadd.s32 %s116, 1
      %s118 = scalar_select %p115, %s116, %s117
      %p121 = pneg %p115
      %p122 = scmp.eq.s32.totalorder %s17, 1
      %p123 = por %p121, %p122
      %p124 = scmp.ne.s32.totalorder %s116, %s119
      %p125 = scmp.eq.s32.totalorder %s17, 0
      %p126 = por %p124, %p125
      %p127 = scmp.ne.s32.totalorder %s116, %s119
      %p128 = scmp.eq.s32.totalorder %s22, 1
      %p129 = por %p127, %p128
      %p130 = scmp.ne.s32.totalorder %s119, %s120
      %p131 = scmp.eq.s32.totalorder %s22, 0
      %p132 = por %p130, %p131
      %p133 = scmp.ne.s32.totalorder %s119, %s120
      %p134 = scmp.eq.s32.totalorder %s23, 1
      %p135 = por %p133, %p134
      %p137 = scmp.ne.s32.totalorder %s120, %s136
      %p138 = scmp.eq.s32.totalorder %s23, 0
      %p139 = por %p137, %p138
      %p140 = scmp.le.s32.totalorder 1, %s17
      %p141 = scmp.lt.s32.totalorder %s17, 3
      %p142 = pnand %p140, %p141
      %p143 = pneg %p142
      // Predicated region
      $region9: #{tpu_custom_call.1} parent=5 // pred_check
        _
      $region10: #{tpu_custom_call.1} parent=5 // pred_check_branch
        %145 = sbr.rel (%p142) target = $region12
      $region11: #{tpu_custom_call.1} parent=5 // pred_region
        %s146 = ssub.s32 %s17, 1
        // Predicated region
        $region13: #{tpu_custom_call.1} parent=11 // pred_check
          %p147 = pneg %p64
        $region14: #{tpu_custom_call.1} parent=11 // pred_check_branch
          %149 = sbr.rel (%p147) target = $region16
        $region15: #{tpu_custom_call.1} parent=11 // pred_region
          %151 = vsyncadd [#allocation6], 0
          %s153 = sshll.u32 %s1, 4
          %s154 = int_to_ptr.hbm [resolvable:$true] %s153
          %s155 = sshll.u32 [#allocation5], 4
          %s156 = int_to_ptr.vmem [resolvable:$true] %s155
          %158 = dma.hbm_to_vmem [thread:$0]  %s154, 16, %s156, [#allocation6]
        $region16: #{tpu_custom_call.1} parent=11 // pred_fallthru
          _
        // Predicated region
        $region17: #{tpu_custom_call.1} parent=11 // pred_check
          %p159 = pneg %p85
        $region18: #{tpu_custom_call.1} parent=11 // pred_check_branch
          %161 = sbr.rel (%p159) target = $region20
        $region19: #{tpu_custom_call.1} parent=11 // pred_region
          _
        $region20: #{tpu_custom_call.1} parent=11 // pred_fallthru
          _
        // Predicated region
        $region21: #{tpu_custom_call.1} parent=11 // pred_check
          %p162 = pneg %p106
        $region22: #{tpu_custom_call.1} parent=11 // pred_check_branch
          %164 = sbr.rel (%p162) target = $region24
        $region23: #{tpu_custom_call.1} parent=11 // pred_region
          _
        $region24: #{tpu_custom_call.1} parent=11 // pred_fallthru
          _
      $region12: #{tpu_custom_call.1} parent=5 // pred_fallthru
        _
      %p165 = scmp.lt.s32.totalorder %s17, 2
      // Predicated region
      $region25: #{tpu_custom_call.1} parent=5 // pred_check
        %p166 = pneg %p165
      $region26: #{tpu_custom_call.1} parent=5 // pred_check_branch
        %168 = sbr.rel (%p166) target = $region28
      $region27: #{tpu_custom_call.1} parent=5 // pred_region
        // Predicated region
        $region29: #{tpu_custom_call.1} parent=27 // pred_check
          %p169 = pneg %p37
        $region30: #{tpu_custom_call.1} parent=27 // pred_check_branch
          %171 = sbr.rel (%p169) target = $region32
        $region31: #{tpu_custom_call.1} parent=27 // pred_region
          %s172 = sand.u32 %s27, 1
          %s173 = scalar_lea.sflag [#allocation3], %s172
          %s174 = sand.u32 %s27, 1
          %s175 = smul.addr %s174, 8
          %s176 = scalar_lea.vmem [#allocation2], %s175
          %178 = vsyncadd %s173, 0
          %s179 = smul.addr %s17, 8
          %s180 = scalar_lea.hbm %s0, %s179
          %s182 = sshll.u32 %s180, 4
          %s183 = int_to_ptr.hbm [resolvable:$true] %s182
          %s184 = sshll.u32 %s176, 4
          %s185 = int_to_ptr.vmem [resolvable:$true] %s184
          %187 = dma.hbm_to_vmem [thread:$0]  %s183, 128, %s185, %s173
        $region32: #{tpu_custom_call.1} parent=27 // pred_fallthru
          _
      $region28: #{tpu_custom_call.1} parent=5 // pred_fallthru
        _
      %p188 = scmp.le.s32.totalorder 1, %s17
      %p189 = scmp.lt.s32.totalorder %s17, 3
      %p190 = pnand %p188, %p189
      %p191 = pneg %p190
      // Predicated region
      $region33: #{tpu_custom_call.1} parent=5 // pred_check
        _
      $region34: #{tpu_custom_call.1} parent=5 // pred_check_branch
        %193 = sbr.rel (%p190) target = $region36
      $region35: #{tpu_custom_call.1} parent=5 // pred_region
        %s194 = ssub.s32 %s17, 1
        %s195 = sand.u32 %s30, 1
        %s196 = scalar_lea.sflag [#allocation3], %s195
        %s197 = sand.u32 %s30, 1
        %s198 = smul.addr %s197, 8
        %s199 = scalar_lea.vmem [#allocation2], %s198
        // Predicated region
        $region37: #{tpu_custom_call.1} parent=35 // pred_check
          %p200 = pneg %p43
        $region38: #{tpu_custom_call.1} parent=35 // pred_check_branch
          %202 = sbr.rel (%p200) target = $region40
        $region39: #{tpu_custom_call.1} parent=35 // pred_region
          %204 = dma.done %s196, 128
        $region40: #{tpu_custom_call.1} parent=35 // pred_fallthru
          _
        // Predicated region
        $region41: #{tpu_custom_call.1} parent=35 // pred_check
          %p205 = pneg %p64
        $region42: #{tpu_custom_call.1} parent=35 // pred_check_branch
          %207 = sbr.rel (%p205) target = $region44
        $region43: #{tpu_custom_call.1} parent=35 // pred_region
          %209 = dma.done [#allocation6], 16
        $region44: #{tpu_custom_call.1} parent=35 // pred_fallthru
          _
        %s210 = sand.u32 %s30, 1
        %s211 = scalar_lea.sflag [#allocation3], %s210
        %s212 = sand.u32 %s30, 1
        %s213 = smul.addr %s212, 8
        %s214 = scalar_lea.vmem [#allocation2], %s213
        %p215 = pneg %p43
        %p216 = pneg %p40
        %p217 = pneg %p64
        %p218 = pneg %p61
        %p219 = pneg %p85
        %p220 = pneg %p82
        %p221 = pneg %p106
        %p222 = pneg %p103
        %p223 = pneg %p132
        %p224 = pneg %p129
        %s225 = sand.u32 %s119, 1
        %s226 = scalar_lea.sflag [#allocation4], %s225
        %s227 = sand.u32 %s119, 1
        %s228 = smul.addr %s227, 8
        %s229 = scalar_lea.vmem [#allocation7], %s228
        %v230 = vld [vmem:[#allocation5] sm:$0x1]
        %v231 = vld [vmem:[%s2] sm:$0x1]
        %v232 = vld [vmem:[%s3] sm:$0x1]
        %v233 = vld [vmem:[%s199] sm:$0xff]
        %v235 = vperm.slane %v230, 0
        %v237 = vmul.f32 %v233, %v235
        %vm238 = vcmask 253952
        %v239 = vsel %vm238, %v230, 0.0
        %240 = vadd.xlane.f32.xlu0 %v239
        %v241 = vpop.xlane.xlu0 %240
        %vm242 = vcmask 261120
        %v243 = vsel %vm242, %v237, 0.0
        %244 = vadd.xlane.f32.xlu0 %v243
        %v245 = vpop.xlane.xlu0 %244
        %v246 = vperm.slane %v241, 0
        %v247 = vrcp.pop %v246
        %v248 = vmul.f32 %v246, %v247
        %v249 = vsub.f32 1.0, %v248
        %v250 = vmul.f32 %v247, %v249
        %v251 = vadd.f32 %v247, %v250
        %vm252 = vweird.f32 %v246
        %vm253 = vweird.f32 %v247
        %vm254 = vmor %vm252, %vm253
        %v255 = vsel %vm254, %v247, %v251
        %v256 = vand.u32 2147483647, %v246
        %vm257 = vcmp.eq.f32.partialorder %v256, 8.507059e+37
        %v258 = vand.u32 %v246, 2147483648
        %v259 = vor.u32 1.1754944e-38, %v258
        %v260 = vsel %vm257, %v259, %v255
        %v261 = vmul.f32 %v245, %v260
        %v262 = vsub.f32 %v237, %v261
        %v263 = vmul.f32 %v262, %v235
        %v264 = vmul.f32 %v263, %v263
        %v265 = vsel %vm242, %v264, 0.0
        %266 = vadd.xlane.f32.xlu0 %v265
        %v267 = vpop.xlane.xlu0 %266
        %v268 = vsub.f32 %v241, 1.0
        %v269 = vperm.slane %v268, 0
        %v270 = vrcp.pop %v269
        %v271 = vmul.f32 %v269, %v270
        %v272 = vsub.f32 1.0, %v271
        %v273 = vmul.f32 %v270, %v272
        %v274 = vadd.f32 %v270, %v273
        %vm275 = vweird.f32 %v269
        %vm276 = vweird.f32 %v270
        %vm277 = vmor %vm275, %vm276
        %v278 = vsel %vm277, %v270, %v274
        %v279 = vand.u32 2147483647, %v269
        %vm280 = vcmp.eq.f32.partialorder %v279, 8.507059e+37
        %v281 = vand.u32 %v269, 2147483648
        %v282 = vor.u32 1.1754944e-38, %v281
        %v283 = vsel %vm280, %v282, %v278
        %v284 = vmul.f32 %v267, %v283
        %v285 = vadd.f32 %v284, 1e-05
        %v286 = vrsqrt.pop %v285
        %v287 = vmul.f32 %v286, %v285
        %v288 = vmul.f32 %v287, %v286
        %v289 = vmul.f32 0.5, %v288
        %v290 = vsub.f32 1.5, %v289
        %v291 = vmul.f32 %v286, %v290
        %vm292 = vweird.f32 %v285
        %vm293 = vweird.f32 %v286
        %vm294 = vmor %vm292, %vm293
        %v295 = vsel %vm294, %v286, %v291
        %v296 = vmul.f32 %v237, 2.0
        %v297 = vsub.f32 %v296, %v261
        %v299 = vperm.slane %v231, 0
        %v301 = vmul.f32 %v299, %v295
        %v302 = vmul.f32 %v297, %v301
        %v304 = vperm.slane %v232, 0
        %v306 = vadd.f32 %v302, %v304
        %307 = vst.msk [vmem:[%s229] sm:$0xff] %vm242, %v306
        %s308 = sand.u32 %s119, 1
        %s309 = scalar_lea.sflag [#allocation4], %s308
        %s310 = sand.u32 %s119, 1
        %s311 = smul.addr %s310, 8
        %s312 = scalar_lea.vmem [#allocation7], %s311
        // Predicated region
        $region45: #{tpu_custom_call.1} parent=35 // pred_check
          %p313 = pneg %p129
        $region46: #{tpu_custom_call.1} parent=35 // pred_check_branch
          %315 = sbr.rel (%p313) target = $region48
        $region47: #{tpu_custom_call.1} parent=35 // pred_region
          %317 = vsyncadd %s309, 0
          %s318 = smul.addr %s22, 8
          %s319 = scalar_lea.hbm %s4, %s318
          %s321 = sshll.u32 %s312, 4
          %s322 = int_to_ptr.vmem [resolvable:$true] %s321
          %s323 = sshll.u32 %s319, 4
          %s324 = int_to_ptr.hbm [resolvable:$true] %s323
          %326 = dma.vmem_to_hbm [thread:$0]  %s322, 128, %s324, %s309
        $region48: #{tpu_custom_call.1} parent=35 // pred_fallthru
          _
      $region36: #{tpu_custom_call.1} parent=5 // pred_fallthru
        _
      %p327 = scmp.le.s32.totalorder 2, %s17
      // Predicated region
      $region49: #{tpu_custom_call.1} parent=5 // pred_check
        %p328 = pneg %p327
      $region50: #{tpu_custom_call.1} parent=5 // pred_check_branch
        %330 = sbr.rel (%p328) target = $region52
      $region51: #{tpu_custom_call.1} parent=5 // pred_region
        %s331 = ssub.s32 %s17, 2
        // Predicated region
        $region53: #{tpu_custom_call.1} parent=51 // pred_check
          %p332 = pneg %p135
        $region54: #{tpu_custom_call.1} parent=51 // pred_check_branch
          %334 = sbr.rel (%p332) target = $region56
        $region55: #{tpu_custom_call.1} parent=51 // pred_region
          %s335 = sand.u32 %s120, 1
          %s336 = scalar_lea.sflag [#allocation4], %s335
          %s337 = sand.u32 %s120, 1
          %s338 = smul.addr %s337, 8
          %s339 = scalar_lea.vmem [#allocation7], %s338
          %341 = dma.done %s336, 128
        $region56: #{tpu_custom_call.1} parent=51 // pred_fallthru
          _
      $region52: #{tpu_custom_call.1} parent=5 // pred_fallthru
        _
    $region6: #{tpu_custom_call.1} parent=1 // loop_footer
      %s21 = sadd.s32 1, %s17
    $region7: #{tpu_custom_call.1} parent=1 // loop_footer_branch
      %16 = sbr.rel target = $region3
    $region8: #{tpu_custom_call.1} parent=1 // loop_exit
      _
    %342 = vsyncpa [#allocation3], 1
    %s343 = scalar_lea.sflag [#allocation3], 1
    %344 = vsyncpa %s343, 1
    %345 = vsyncpa [#allocation6], 1
    %346 = vsyncpa [#allocation4], 1
    %s347 = scalar_lea.sflag [#allocation4], 1
    %348 = vsyncpa %s347, 1

</llo_original>
